<compile_context>
chip_gen: v7x
topology: tpu7x:2x2x1
jax: 0.10.0
libtpu: 0.0.40
codegen_flags: <defaults>
</compile_context>

<pallas_src>
import jax
import jax.numpy as jnp
from jax import lax
from jax.experimental import pallas as pl
from jax.experimental.pallas import tpu as pltpu


def _make_cedt_kernel(t_q, t_kc, nkc):
    """Closure over Python ints only (queries/tile, keys/chunk, #key chunks)."""
    n_sub = t_kc // 8  # sublane blocks per key chunk

    def kernel(kfeat_ref, qfeat_ref, out_ref):
        # Per-tile query features, lane-dense:
        # rows = [-2*qr, -2*qc, 1, 1, 1, qnorm, sign, 0]   shape (8, t_q)
        qall = qfeat_ref[0]

        def body(c, carry):
            # Key-chunk features: rows = [kr, kc, knorm_hi, knorm_mid, knorm_lo, 0,0,0]
            ksl = kfeat_ref[c]  # (8, t_kc) f32 — dynamic index on the leading dim
            # MXU: (d2 - qnorm)[k, q] = sum_f ksl[f, k] * qall[f, q]
            d2p = lax.dot_general(
                ksl, qall,
                dimension_numbers=(((0,), (0,)), ((), ())),
                preferred_element_type=jnp.float32)          # (t_kc, t_q)
            # Fold keys (sublane axis) down to one sublane block: pure VPU mins,
            # no scratch traffic, no cross-lane ops in the hot loop.
            part = d2p[0:8, :]
            for j in range(1, n_sub):
                part = jnp.minimum(part, d2p[8 * j:8 * (j + 1), :])
            return jnp.minimum(carry, part)                  # (8, t_q) vreg-resident

        # Init > any masked-key value (masked keys land around ~2.1e6).
        init = jnp.full((8, t_q), 3.0e9, dtype=jnp.float32)
        carry = lax.fori_loop(0, nkc, body, init, unroll=2)

        # Epilogue (once per query tile): cross-sublane min, add per-query norm,
        # sqrt on the EUP, apply fg/bg sign, lane-dense (multiple-of-128) store.
        d2min = jnp.min(carry, axis=0, keepdims=True)        # (1, t_q)
        qnorm = qall[5:6, :]
        sign = qall[6:7, :]
        d2 = jnp.maximum(d2min + qnorm, 0.0)
        out_ref[...] = (jnp.sqrt(d2) * sign).reshape(1, 1, t_q)

    return kernel


def cedt_pallas(x, t_q=256, t_kc=128):
    """Fused distance_transform_edt(x > 0.5) + signed combination (cedt)."""
    _, h, w = x.shape
    n = h * w
    # Exactness bound: integer coords <= 255 and the virtual point 1024 are exactly
    # bf16-representable, so all MXU products/sums are exact (< 2^24).
    assert max(h, w) <= 256, "TODO(synk): >256 px/side needs a wider feature split"

    npad128 = ((n + 127) // 128) * 128
    t_q = max(128, min(t_q, npad128))
    t_q -= t_q % 128
    t_kc = max(128, min(t_kc, t_q))
    t_kc -= t_kc % 128
    assert t_q % 128 == 0 and t_kc % 128 == 0 and t_q % t_kc == 0

    n_pad = ((n + t_q - 1) // t_q) * t_q
    nqt = n_pad // t_q   # query tiles (grid, "parallel")
    nkc = n_pad // t_kc  # key chunks (in-kernel fori_loop)

    VIRT = 1024  # virtual far point for masked (foreground / padded) keys

    xf = x.reshape(-1)
    fg = jnp.pad(xf > 0.5, (0, n_pad - n), constant_values=True)

    # Exact integer coordinates (host side) — no in-kernel float floor-division.
    idx = jnp.arange(n_pad, dtype=jnp.int32)
    row = idx // w
    col = idx - row * w

    # ---- key features (lane-dense, resident in VMEM once) ----
    kr = jnp.where(fg, VIRT, row)
    kc = jnp.where(fg, VIRT, col)
    knorm = kr * kr + kc * kc                 # <= 2*1024^2 = 2^21
    k_hi = (knorm >> 14) << 14                # 3-way split: each piece bf16-exact
    k_mid = ((knorm >> 7) & 0x7F) << 7
    k_lo = knorm & 0x7F
    zero = jnp.zeros_like(kr)
    kfeat = jnp.stack([kr, kc, k_hi, k_mid, k_lo, zero, zero, zero]).astype(jnp.float32)
    karr = kfeat.reshape(8, nkc, t_kc).transpose(1, 0, 2)      # (nkc, 8, t_kc)

    # ---- query features (one lane-dense block per query tile) ----
    qnorm = (row * row + col * col).astype(jnp.float32)
    sign = jnp.where(fg, 1.0, -1.0).astype(jnp.float32)
    one = jnp.ones_like(qnorm)
    qfeat = jnp.stack([(-2 * row).astype(jnp.float32),
                       (-2 * col).astype(jnp.float32),
                       one, one, one, qnorm, sign, jnp.zeros_like(one)])
    qarr = qfeat.reshape(8, nqt, t_q).transpose(1, 0, 2)       # (nqt, 8, t_q)

    kernel = _make_cedt_kernel(t_q, t_kc, nkc)

    out = pl.pallas_call(
        kernel,
        out_shape=jax.ShapeDtypeStruct((nqt, 1, t_q), jnp.float32),
        grid_spec=pltpu.PrefetchScalarGridSpec(
            num_scalar_prefetch=0,
            grid=(nqt,),
            in_specs=[
                # Full key-feature array, resident in VMEM (constant block index).
                pl.BlockSpec((nkc, 8, t_kc), lambda i: (0, 0, 0)),
                # Per-tile query features, lane-dense.
                pl.BlockSpec((1, 8, t_q), lambda i: (i, 0, 0)),
            ],
            out_specs=pl.BlockSpec((1, 1, t_q), lambda i: (i, 0, 0)),
        ),
        compiler_params=pltpu.CompilerParams(
            dimension_semantics=("parallel",),
            vmem_limit_bytes=48 * 1024 * 1024,   # <= v7x 64 MiB/TC with headroom
        ),
    )(karr, qarr)

    # Note (degenerate case): if the image has no background pixel at all, the
    # masked sentinel distance (~sqrt(2)*1024) is returned instead of the
    # reference's sqrt(1e30); both are "undefined" for that case.
    return out.reshape(-1)[:n].reshape(1, h, w)


def cedt_reference(x):
    """Pure-JAX reference (brute-force EDT + signed combination)."""
    _, h, w = x.shape
    xf = x.reshape(-1).astype(jnp.float32)
    fg = xf > 0.5
    rr = jnp.repeat(jnp.arange(h, dtype=jnp.float32), w)
    cc = jnp.tile(jnp.arange(w, dtype=jnp.float32), h)
    d2 = (rr[:, None] - rr[None, :]) ** 2 + (cc[:, None] - cc[None, :]) ** 2
    d2 = jnp.where(~fg[None, :], d2, jnp.float32(1e30))
    edt = jnp.sqrt(jnp.min(d2, axis=1))
    cedt = edt * fg.astype(jnp.float32) - edt * (~fg).astype(jnp.float32)
    return cedt.reshape(1, h, w)


if __name__ == "__main__":
    key = jax.random.PRNGKey(0)
    # Small (1, H, W) input consistent with the module's flattened-image convention.
    x = jax.random.uniform(key, (1, 16, 16), dtype=jnp.float32)

    out = jax.block_until_ready(cedt_pallas(x))
    ref = jax.block_until_ready(cedt_reference(x))

    assert out.shape == (1, 16, 16)
    assert jnp.allclose(out, ref, atol=1e-4, rtol=1e-4), "mismatch vs reference"

    print("KERNEL_OK")
</pallas_src>

<mosaic_0001>
module attributes {stable_mosaic.version = 11 : i64} {
  func.func @kernel(%arg0: i32, %arg1: memref<2x8x128xf32, #tpu.memory_space<vmem>>, %arg2: memref<1x8x256xf32, #tpu.memory_space<vmem>>, %arg3: memref<1x1x256xf32, #tpu.memory_space<vmem>>) attributes {dimension_semantics = [#tpu.dimension_semantics<parallel>], iteration_bounds = array<i64: 1>, scalar_prefetch = 0 : i64, scratch_operands = 0 : i64, tpu.core_type = #tpu.core_type<tc>, window_params = [{pipeline_mode = #tpu.pipeline_mode<synchronous>, transform_indices = @transform_0, window_bounds = array<i64: 2, 8, 128>}, {transform_indices = @transform_1, window_bounds = array<i64: 1, 8, 256>}, {transform_indices = @transform_2, window_bounds = array<i64: 1, 1, 256>}]} {
    %c0 = arith.constant 0 : index
    %c0_0 = arith.constant 0 : index
    %c0_1 = arith.constant 0 : index
    %0 = vector.load %arg2[%c0, %c0_0, %c0_1] : memref<1x8x256xf32, #tpu.memory_space<vmem>>, vector<1x8x256xf32>
    %1 = vector.shape_cast %0 : vector<1x8x256xf32> to vector<8x256xf32>
    %cst = arith.constant 3.000000e+09 : f32
    %2 = vector.broadcast %cst : f32 to vector<8x256xf32>
    %c0_i32 = arith.constant 0 : i32
    %3 = arith.index_cast %c0_i32 : i32 to index
    %c0_2 = arith.constant 0 : index
    %c0_3 = arith.constant 0 : index
    %4 = vector.load %arg1[%3, %c0_2, %c0_3] : memref<2x8x128xf32, #tpu.memory_space<vmem>>, vector<1x8x128xf32>
    %5 = vector.shape_cast %4 : vector<1x8x128xf32> to vector<8x128xf32>
    %cst_4 = arith.constant dense<0.000000e+00> : vector<128x256xf32>
    %6 = tpu.matmul %5, %1, %cst_4 {dimension_numbers = #tpu.dot_dimension_numbers<[0], [0], [1], [1], [0, 1, 1, 1], [], []>} : vector<8x128xf32>, vector<8x256xf32>, vector<128x256xf32> -> vector<128x256xf32>
    %7 = vector.extract_strided_slice %6 {offsets = [0, 0], sizes = [8, 256], strides = [1, 1]} : vector<128x256xf32> to vector<8x256xf32>
    %8 = vector.extract_strided_slice %6 {offsets = [8, 0], sizes = [8, 256], strides = [1, 1]} : vector<128x256xf32> to vector<8x256xf32>
    %9 = arith.minimumf %7, %8 : vector<8x256xf32>
    %10 = vector.extract_strided_slice %6 {offsets = [16, 0], sizes = [8, 256], strides = [1, 1]} : vector<128x256xf32> to vector<8x256xf32>
    %11 = arith.minimumf %9, %10 : vector<8x256xf32>
    %12 = vector.extract_strided_slice %6 {offsets = [24, 0], sizes = [8, 256], strides = [1, 1]} : vector<128x256xf32> to vector<8x256xf32>
    %13 = arith.minimumf %11, %12 : vector<8x256xf32>
    %14 = vector.extract_strided_slice %6 {offsets = [32, 0], sizes = [8, 256], strides = [1, 1]} : vector<128x256xf32> to vector<8x256xf32>
    %15 = arith.minimumf %13, %14 : vector<8x256xf32>
    %16 = vector.extract_strided_slice %6 {offsets = [40, 0], sizes = [8, 256], strides = [1, 1]} : vector<128x256xf32> to vector<8x256xf32>
    %17 = arith.minimumf %15, %16 : vector<8x256xf32>
    %18 = vector.extract_strided_slice %6 {offsets = [48, 0], sizes = [8, 256], strides = [1, 1]} : vector<128x256xf32> to vector<8x256xf32>
    %19 = arith.minimumf %17, %18 : vector<8x256xf32>
    %20 = vector.extract_strided_slice %6 {offsets = [56, 0], sizes = [8, 256], strides = [1, 1]} : vector<128x256xf32> to vector<8x256xf32>
    %21 = arith.minimumf %19, %20 : vector<8x256xf32>
    %22 = vector.extract_strided_slice %6 {offsets = [64, 0], sizes = [8, 256], strides = [1, 1]} : vector<128x256xf32> to vector<8x256xf32>
    %23 = arith.minimumf %21, %22 : vector<8x256xf32>
    %24 = vector.extract_strided_slice %6 {offsets = [72, 0], sizes = [8, 256], strides = [1, 1]} : vector<128x256xf32> to vector<8x256xf32>
    %25 = arith.minimumf %23, %24 : vector<8x256xf32>
    %26 = vector.extract_strided_slice %6 {offsets = [80, 0], sizes = [8, 256], strides = [1, 1]} : vector<128x256xf32> to vector<8x256xf32>
    %27 = arith.minimumf %25, %26 : vector<8x256xf32>
    %28 = vector.extract_strided_slice %6 {offsets = [88, 0], sizes = [8, 256], strides = [1, 1]} : vector<128x256xf32> to vector<8x256xf32>
    %29 = arith.minimumf %27, %28 : vector<8x256xf32>
    %30 = vector.extract_strided_slice %6 {offsets = [96, 0], sizes = [8, 256], strides = [1, 1]} : vector<128x256xf32> to vector<8x256xf32>
    %31 = arith.minimumf %29, %30 : vector<8x256xf32>
    %32 = vector.extract_strided_slice %6 {offsets = [104, 0], sizes = [8, 256], strides = [1, 1]} : vector<128x256xf32> to vector<8x256xf32>
    %33 = arith.minimumf %31, %32 : vector<8x256xf32>
    %34 = vector.extract_strided_slice %6 {offsets = [112, 0], sizes = [8, 256], strides = [1, 1]} : vector<128x256xf32> to vector<8x256xf32>
    %35 = arith.minimumf %33, %34 : vector<8x256xf32>
    %36 = vector.extract_strided_slice %6 {offsets = [120, 0], sizes = [8, 256], strides = [1, 1]} : vector<128x256xf32> to vector<8x256xf32>
    %37 = arith.minimumf %35, %36 : vector<8x256xf32>
    %38 = arith.minimumf %2, %37 : vector<8x256xf32>
    %c1_i32 = arith.constant 1 : i32
    %39 = arith.index_cast %c1_i32 : i32 to index
    %c0_5 = arith.constant 0 : index
    %c0_6 = arith.constant 0 : index
    %40 = vector.load %arg1[%39, %c0_5, %c0_6] : memref<2x8x128xf32, #tpu.memory_space<vmem>>, vector<1x8x128xf32>
    %41 = vector.shape_cast %40 : vector<1x8x128xf32> to vector<8x128xf32>
    %cst_7 = arith.constant dense<0.000000e+00> : vector<128x256xf32>
    %42 = tpu.matmul %41, %1, %cst_7 {dimension_numbers = #tpu.dot_dimension_numbers<[0], [0], [1], [1], [0, 1, 1, 1], [], []>} : vector<8x128xf32>, vector<8x256xf32>, vector<128x256xf32> -> vector<128x256xf32>
    %43 = vector.extract_strided_slice %42 {offsets = [0, 0], sizes = [8, 256], strides = [1, 1]} : vector<128x256xf32> to vector<8x256xf32>
    %44 = vector.extract_strided_slice %42 {offsets = [8, 0], sizes = [8, 256], strides = [1, 1]} : vector<128x256xf32> to vector<8x256xf32>
    %45 = arith.minimumf %43, %44 : vector<8x256xf32>
    %46 = vector.extract_strided_slice %42 {offsets = [16, 0], sizes = [8, 256], strides = [1, 1]} : vector<128x256xf32> to vector<8x256xf32>
    %47 = arith.minimumf %45, %46 : vector<8x256xf32>
    %48 = vector.extract_strided_slice %42 {offsets = [24, 0], sizes = [8, 256], strides = [1, 1]} : vector<128x256xf32> to vector<8x256xf32>
    %49 = arith.minimumf %47, %48 : vector<8x256xf32>
    %50 = vector.extract_strided_slice %42 {offsets = [32, 0], sizes = [8, 256], strides = [1, 1]} : vector<128x256xf32> to vector<8x256xf32>
    %51 = arith.minimumf %49, %50 : vector<8x256xf32>
    %52 = vector.extract_strided_slice %42 {offsets = [40, 0], sizes = [8, 256], strides = [1, 1]} : vector<128x256xf32> to vector<8x256xf32>
    %53 = arith.minimumf %51, %52 : vector<8x256xf32>
    %54 = vector.extract_strided_slice %42 {offsets = [48, 0], sizes = [8, 256], strides = [1, 1]} : vector<128x256xf32> to vector<8x256xf32>
    %55 = arith.minimumf %53, %54 : vector<8x256xf32>
    %56 = vector.extract_strided_slice %42 {offsets = [56, 0], sizes = [8, 256], strides = [1, 1]} : vector<128x256xf32> to vector<8x256xf32>
    %57 = arith.minimumf %55, %56 : vector<8x256xf32>
    %58 = vector.extract_strided_slice %42 {offsets = [64, 0], sizes = [8, 256], strides = [1, 1]} : vector<128x256xf32> to vector<8x256xf32>
    %59 = arith.minimumf %57, %58 : vector<8x256xf32>
    %60 = vector.extract_strided_slice %42 {offsets = [72, 0], sizes = [8, 256], strides = [1, 1]} : vector<128x256xf32> to vector<8x256xf32>
    %61 = arith.minimumf %59, %60 : vector<8x256xf32>
    %62 = vector.extract_strided_slice %42 {offsets = [80, 0], sizes = [8, 256], strides = [1, 1]} : vector<128x256xf32> to vector<8x256xf32>
    %63 = arith.minimumf %61, %62 : vector<8x256xf32>
    %64 = vector.extract_strided_slice %42 {offsets = [88, 0], sizes = [8, 256], strides = [1, 1]} : vector<128x256xf32> to vector<8x256xf32>
    %65 = arith.minimumf %63, %64 : vector<8x256xf32>
    %66 = vector.extract_strided_slice %42 {offsets = [96, 0], sizes = [8, 256], strides = [1, 1]} : vector<128x256xf32> to vector<8x256xf32>
    %67 = arith.minimumf %65, %66 : vector<8x256xf32>
    %68 = vector.extract_strided_slice %42 {offsets = [104, 0], sizes = [8, 256], strides = [1, 1]} : vector<128x256xf32> to vector<8x256xf32>
    %69 = arith.minimumf %67, %68 : vector<8x256xf32>
    %70 = vector.extract_strided_slice %42 {offsets = [112, 0], sizes = [8, 256], strides = [1, 1]} : vector<128x256xf32> to vector<8x256xf32>
    %71 = arith.minimumf %69, %70 : vector<8x256xf32>
    %72 = vector.extract_strided_slice %42 {offsets = [120, 0], sizes = [8, 256], strides = [1, 1]} : vector<128x256xf32> to vector<8x256xf32>
    %73 = arith.minimumf %71, %72 : vector<8x256xf32>
    %74 = arith.minimumf %38, %73 : vector<8x256xf32>
    %c2_i32 = arith.constant 2 : i32
    %cst_8 = arith.constant dense<0x7F800000> : vector<256xf32>
    %75 = vector.multi_reduction <minimumf>, %74, %cst_8 [0] : vector<8x256xf32> to vector<256xf32>
    %76 = vector.shape_cast %75 : vector<256xf32> to vector<1x256xf32>
    %77 = vector.extract_strided_slice %1 {offsets = [5, 0], sizes = [1, 256], strides = [1, 1]} : vector<8x256xf32> to vector<1x256xf32>
    %78 = vector.extract_strided_slice %1 {offsets = [6, 0], sizes = [1, 256], strides = [1, 1]} : vector<8x256xf32> to vector<1x256xf32>
    %79 = arith.addf %76, %77 : vector<1x256xf32>
    %cst_9 = arith.constant 0.000000e+00 : f32
    %80 = vector.broadcast %cst_9 : f32 to vector<1x256xf32>
    %81 = arith.maximumf %79, %80 : vector<1x256xf32>
    %82 = math.sqrt %81 : vector<1x256xf32>
    %83 = arith.mulf %82, %78 : vector<1x256xf32>
    %84 = vector.shape_cast %83 : vector<1x256xf32> to vector<1x1x256xf32>
    %c0_10 = arith.constant 0 : index
    %c0_11 = arith.constant 0 : index
    %c0_12 = arith.constant 0 : index
    %85 = vector.load %arg3[%c0_10, %c0_11, %c0_12] : memref<1x1x256xf32, #tpu.memory_space<vmem>>, vector<1x1x256xf32>
    tpu.vector_store %arg3[%c0_10, %c0_11, %c0_12], %84 {strides = array<i32>} : memref<1x1x256xf32, #tpu.memory_space<vmem>>, vector<1x1x256xf32>,
    return
  }
  func.func @transform_0(%arg0: i32) -> (i32, i32, i32) {
    %c0_i32 = arith.constant 0 : i32
    %c0_i32_0 = arith.constant 0 : i32
    %c0_i32_1 = arith.constant 0 : i32
    %c0_i32_2 = arith.constant 0 : i32
    return %c0_i32, %c0_i32_0, %c0_i32_1 : i32, i32, i32
  }
  func.func @transform_1(%arg0: i32) -> (i32, i32, i32) {
    %c0_i32 = arith.constant 0 : i32
    %c0_i32_0 = arith.constant 0 : i32
    %c0_i32_1 = arith.constant 0 : i32
    return %arg0, %c0_i32, %c0_i32_0 : i32, i32, i32
  }
  func.func @transform_2(%arg0: i32) -> (i32, i32, i32) {
    %c0_i32 = arith.constant 0 : i32
    %c0_i32_0 = arith.constant 0 : i32
    %c0_i32_1 = arith.constant 0 : i32
    return %arg0, %c0_i32, %c0_i32_0 : i32, i32, i32
  }
}

</mosaic_0001>

<llo_original>
// kernel: tpu_custom_call.1
$region0: #{tpu_custom_call.1}
  #allocation0 [shape = 'u32[]', space=smem, size = 0x4, offset = 0x4, fixed_abs, tag = 'smem constant byte address 0x4 - core index']
  #allocation1 [shape = 'u32[144,128]{1,0:T(1,128)}', space=vmem, size = 0x12000, scoped, tag = 'internal scratch']
  %s0 = inlined_call_operand.hbm [shape: f32[2,8,128], index: 0, kind: input, shape index: {}]
  %s1 = inlined_call_operand.hbm [shape: f32[1,8,256], index: 1, kind: input, shape index: {}]
  %s2 = inlined_call_operand.hbm [shape: f32[1,1,256], index: 2, kind: output, shape index: {}]
  %s3 = sld [smem:[#allocation0]]
  $region26: #{tpu_custom_call.1} parent=0
    _
  %s5 = ssub.s32 1, %s3
  %s6 = scalar_select 0, %s5, %s3
  $region1: #{tpu_custom_call.1} parent=0
    #allocation2 [shape = 'u8[8192]{0}', space=vmem, size = 0x2000, scoped, tag = 'input window, operand 0, single buffered']
    #allocation3 [shape = 's32[1]{0}', space=sflag, size = 0x4, scoped, tag = 'scoped memory for tpu_custom_call.1']
    #allocation4 [shape = 's32[1]{0}', space=sflag, size = 0x4, scoped, tag = 'scoped memory for tpu_custom_call.1']
    #allocation5 [shape = 'u8[8192]{0}', space=vmem, size = 0x2000, scoped, tag = 'input window, operand 1, single buffered']
    #allocation6 [shape = 's32[1]{0}', space=sflag, size = 0x4, scoped, tag = 'scoped memory for tpu_custom_call.1']
    #allocation7 [shape = 'u8[1024]{0}', space=vmem, size = 0x400, scoped, tag = 'output window, operand 0, single buffered']
    %7 = vsyncpa [#allocation3], 0
    %8 = vsyncpa [#allocation6], 0
    %9 = vsyncpa [#allocation4], 0
    // Predicated region
    $region2: #{tpu_custom_call.1} parent=1 // pred_check
      _
    $region3: #{tpu_custom_call.1} parent=1 // pred_check_branch
      %11 = sbr.rel (0) target = $region5
    $region4: #{tpu_custom_call.1} parent=1 // pred_region
      %s13 = ssub.s32 256, 256
      %14 = vsyncadd [#allocation3], %s13
      %s15 = sshll.u32 [#allocation2], 4
      %s16 = int_to_ptr.vmem [resolvable:$true] %s15
      %21 = dma.hbm_to_vmem [thread:$0]  %s0, 256, %s16, [#allocation3], 128, 128, 8
    $region5: #{tpu_custom_call.1} parent=1 // pred_fallthru
      _
    // Predicated region
    $region6: #{tpu_custom_call.1} parent=1 // pred_check
      _
    $region7: #{tpu_custom_call.1} parent=1 // pred_check_branch
      %23 = sbr.rel (0) target = $region9
    $region8: #{tpu_custom_call.1} parent=1 // pred_region
      %s25 = ssub.s32 256, 256
      %26 = vsyncadd [#allocation6], %s25
      %s28 = sshll.u32 [#allocation5], 4
      %s29 = int_to_ptr.vmem [resolvable:$true] %s28
      %31 = dma.hbm_to_vmem [thread:$0]  %s1, 256, %s29, [#allocation6]
    $region9: #{tpu_custom_call.1} parent=1 // pred_fallthru
      _
    // Predicated region
    $region10: #{tpu_custom_call.1} parent=1 // pred_check
      _
    $region11: #{tpu_custom_call.1} parent=1 // pred_check_branch
      %33 = sbr.rel (0) target = $region13
    $region12: #{tpu_custom_call.1} parent=1 // pred_region
      %34 = dma.done [#allocation3], 256
    $region13: #{tpu_custom_call.1} parent=1 // pred_fallthru
      _
    // Predicated region
    $region14: #{tpu_custom_call.1} parent=1 // pred_check
      _
    $region15: #{tpu_custom_call.1} parent=1 // pred_check_branch
      %36 = sbr.rel (0) target = $region17
    $region16: #{tpu_custom_call.1} parent=1 // pred_region
      %37 = dma.done [#allocation6], 256
    $region17: #{tpu_custom_call.1} parent=1 // pred_fallthru
      _
    %v38 = vld [vmem:[#allocation5] sm:$0xff]
    %v39 = vld [vmem:[#allocation5 + $0x8] sm:$0xff]
    %v40 = vld [vmem:[#allocation2] sm:$0xff]
    %41 = vxpose.xlu0.b32.start [1/16] %v40, 128
    %42 = vxpose.xlu0.b32.cont [2/16] 0.0, 128
    %43 = vxpose.xlu0.b32.cont [3/16] 0.0, 128
    %44 = vxpose.xlu0.b32.cont [4/16] 0.0, 128
    %45 = vxpose.xlu0.b32.cont [5/16] 0.0, 128
    %46 = vxpose.xlu0.b32.cont [6/16] 0.0, 128
    %47 = vxpose.xlu0.b32.cont [7/16] 0.0, 128
    %48 = vxpose.xlu0.b32.cont [8/16] 0.0, 128
    %49 = vxpose.xlu0.b32.cont [9/16] 0.0, 128
    %50 = vxpose.xlu0.b32.cont [10/16] 0.0, 128
    %51 = vxpose.xlu0.b32.cont [11/16] 0.0, 128
    %52 = vxpose.xlu0.b32.cont [12/16] 0.0, 128
    %53 = vxpose.xlu0.b32.cont [13/16] 0.0, 128
    %54 = vxpose.xlu0.b32.cont [14/16] 0.0, 128
    %55 = vxpose.xlu0.b32.cont [15/16] 0.0, 128
    %56 = vxpose.xlu0.b32.end [16/16] 0.0, 128
    %v57 = vpop.trf.xlu0
    %v58 = vpop.trf.xlu0
    %v59 = vpop.trf.xlu0
    %v60 = vpop.trf.xlu0
    %v61 = vpop.trf.xlu0
    %v62 = vpop.trf.xlu0
    %v63 = vpop.trf.xlu0
    %v64 = vpop.trf.xlu0
    %v65 = vpop.trf.xlu0
    %v66 = vpop.trf.xlu0
    %v67 = vpop.trf.xlu0
    %v68 = vpop.trf.xlu0
    %v69 = vpop.trf.xlu0
    %v70 = vpop.trf.xlu0
    %v71 = vpop.trf.xlu0
    %v72 = vpop.trf.xlu0
    %vm73 = vcmask 64512
    %v75 = vsel %vm73, %v57, 0
    %v78 = vsel %vm73, %v58, 0
    %v81 = vsel %vm73, %v59, 0
    %v84 = vsel %vm73, %v60, 0
    %v87 = vsel %vm73, %v61, 0
    %v90 = vsel %vm73, %v62, 0
    %v93 = vsel %vm73, %v63, 0
    %v96 = vsel %vm73, %v64, 0
    %v99 = vsel %vm73, %v65, 0
    %v102 = vsel %vm73, %v66, 0
    %v105 = vsel %vm73, %v67, 0
    %v108 = vsel %vm73, %v68, 0
    %v111 = vsel %vm73, %v69, 0
    %v114 = vsel %vm73, %v70, 0
    %v117 = vsel %vm73, %v71, 0
    %v120 = vsel %vm73, %v72, 0
    %122 = vmatprep.subr.mxu0 %v39
    %123 = vmatpush1.msra.mxu0 %v38
    %124 = vmatprep.subr.mxu0 0.0
    %125 = vmatpush1.msra.mxu0 0.0
    %126 = vmatprep.subr.mxu0 0.0
    %127 = vmatpush1.msra.mxu0 0.0
    %128 = vmatprep.subr.mxu0 0.0
    %129 = vmatpush1.msra.mxu0 0.0
    %130 = vmatprep.subr.mxu0 0.0
    %131 = vmatpush1.msra.mxu0 0.0
    %132 = vmatprep.subr.mxu0 0.0
    %133 = vmatpush1.msra.mxu0 0.0
    %134 = vmatprep.subr.mxu0 0.0
    %135 = vmatpush1.msra.mxu0 0.0
    %136 = vmatprep.subr.mxu0 0.0
    %137 = vmatpush1.msra.mxu0 0.0
    %138 = vmatprep.subr.mxu0 0.0
    %139 = vmatpush1.msra.mxu0 0.0
    %140 = vmatprep.subr.mxu0 0.0
    %141 = vmatpush1.msra.mxu0 0.0
    %142 = vmatprep.subr.mxu0 0.0
    %143 = vmatpush1.msra.mxu0 0.0
    %144 = vmatprep.subr.mxu0 0.0
    %145 = vmatpush1.msra.mxu0 0.0
    %146 = vmatprep.subr.mxu0 0.0
    %147 = vmatpush1.msra.mxu0 0.0
    %148 = vmatprep.subr.mxu0 0.0
    %149 = vmatpush1.msra.mxu0 0.0
    %150 = vmatprep.subr.mxu0 0.0
    %151 = vmatpush1.msra.mxu0 0.0
    %152 = vmatprep.subr.mxu0 0.0
    %153 = vmatpush1.msra.mxu0 0.0
    %154 = vmatprep.subr.mxu0 0.0
    %155 = vmatpush1.msra.mxu0 0.0
    %156 = vmatprep.subr.mxu0 0.0
    %157 = vmatpush1.msra.mxu0 0.0
    %158 = vmatprep.subr.mxu0 0.0
    %159 = vmatpush1.msra.mxu0 0.0
    %160 = vmatprep.subr.mxu0 0.0
    %161 = vmatpush1.msra.mxu0 0.0
    %162 = vmatprep.subr.mxu0 0.0
    %163 = vmatpush1.msra.mxu0 0.0
    %164 = vmatprep.subr.mxu0 0.0
    %165 = vmatpush1.msra.mxu0 0.0
    %166 = vmatprep.subr.mxu0 0.0
    %167 = vmatpush1.msra.mxu0 0.0
    %168 = vmatprep.subr.mxu0 0.0
    %169 = vmatpush1.msra.mxu0 0.0
    %170 = vmatprep.subr.mxu0 0.0
    %171 = vmatpush1.msra.mxu0 0.0
    %172 = vmatprep.subr.mxu0 0.0
    %173 = vmatpush1.msra.mxu0 0.0
    %174 = vmatprep.subr.mxu0 0.0
    %175 = vmatpush1.msra.mxu0 0.0
    %176 = vmatprep.subr.mxu0 0.0
    %177 = vmatpush1.msra.mxu0 0.0
    %178 = vmatprep.subr.mxu0 0.0
    %179 = vmatpush1.msra.mxu0 0.0
    %180 = vmatprep.subr.mxu0 0.0
    %181 = vmatpush1.msra.mxu0 0.0
    %182 = vmatprep.subr.mxu0 0.0
    %183 = vmatpush1.msra.mxu0 0.0
    %184 = vmatprep.subr.mxu0 0.0
    %185 = vmatpush1.msra.mxu0 0.0
    %186 = vmatprep.mubr.f32.mxu0 0.0
    %187 = vmatmul.mubr.f32.gmra.mrb[0].mxu0 %v75
    %v188 = vpop.f32.mrb[0].mxu0
    %v189 = vadd.f32 0.0, %v188
    %v190 = vpop.f32.mrb[0].mxu0
    %v191 = vadd.f32 0.0, %v190
    %192 = vmatprep.mubr.f32.mxu0 0.0
    %193 = vmatmul.mubr.f32.gmra.mrb[0].mxu0 %v78
    %v194 = vpop.f32.mrb[0].mxu0
    %v195 = vadd.f32 0.0, %v194
    %v196 = vpop.f32.mrb[0].mxu0
    %v197 = vadd.f32 0.0, %v196
    %198 = vmatprep.mubr.f32.mxu0 0.0
    %199 = vmatmul.mubr.f32.gmra.mrb[0].mxu0 %v81
    %v200 = vpop.f32.mrb[0].mxu0
    %v201 = vadd.f32 0.0, %v200
    %v202 = vpop.f32.mrb[0].mxu0
    %v203 = vadd.f32 0.0, %v202
    %204 = vmatprep.mubr.f32.mxu0 0.0
    %205 = vmatmul.mubr.f32.gmra.mrb[0].mxu0 %v84
    %v206 = vpop.f32.mrb[0].mxu0
    %v207 = vadd.f32 0.0, %v206
    %v208 = vpop.f32.mrb[0].mxu0
    %v209 = vadd.f32 0.0, %v208
    %210 = vmatprep.mubr.f32.mxu0 0.0
    %211 = vmatmul.mubr.f32.gmra.mrb[0].mxu0 %v87
    %v212 = vpop.f32.mrb[0].mxu0
    %v213 = vadd.f32 0.0, %v212
    %v214 = vpop.f32.mrb[0].mxu0
    %v215 = vadd.f32 0.0, %v214
    %216 = vmatprep.mubr.f32.mxu0 0.0
    %217 = vmatmul.mubr.f32.gmra.mrb[0].mxu0 %v90
    %v218 = vpop.f32.mrb[0].mxu0
    %v219 = vadd.f32 0.0, %v218
    %v220 = vpop.f32.mrb[0].mxu0
    %v221 = vadd.f32 0.0, %v220
    %222 = vmatprep.mubr.f32.mxu0 0.0
    %223 = vmatmul.mubr.f32.gmra.mrb[0].mxu0 %v93
    %v224 = vpop.f32.mrb[0].mxu0
    %v225 = vadd.f32 0.0, %v224
    %v226 = vpop.f32.mrb[0].mxu0
    %v227 = vadd.f32 0.0, %v226
    %228 = vmatprep.mubr.f32.mxu0 0.0
    %229 = vmatmul.mubr.f32.gmra.mrb[0].mxu0 %v96
    %v230 = vpop.f32.mrb[0].mxu0
    %v231 = vadd.f32 0.0, %v230
    %v232 = vpop.f32.mrb[0].mxu0
    %v233 = vadd.f32 0.0, %v232
    %234 = vmatprep.mubr.f32.mxu0 0.0
    %235 = vmatmul.mubr.f32.gmra.mrb[0].mxu0 %v99
    %v236 = vpop.f32.mrb[0].mxu0
    %v237 = vadd.f32 0.0, %v236
    %v238 = vpop.f32.mrb[0].mxu0
    %v239 = vadd.f32 0.0, %v238
    %240 = vmatprep.mubr.f32.mxu0 0.0
    %241 = vmatmul.mubr.f32.gmra.mrb[0].mxu0 %v102
    %v242 = vpop.f32.mrb[0].mxu0
    %v243 = vadd.f32 0.0, %v242
    %v244 = vpop.f32.mrb[0].mxu0
    %v245 = vadd.f32 0.0, %v244
    %246 = vmatprep.mubr.f32.mxu0 0.0
    %247 = vmatmul.mubr.f32.gmra.mrb[0].mxu0 %v105
    %v248 = vpop.f32.mrb[0].mxu0
    %v249 = vadd.f32 0.0, %v248
    %v250 = vpop.f32.mrb[0].mxu0
    %v251 = vadd.f32 0.0, %v250
    %252 = vmatprep.mubr.f32.mxu0 0.0
    %253 = vmatmul.mubr.f32.gmra.mrb[0].mxu0 %v108
    %v254 = vpop.f32.mrb[0].mxu0
    %v255 = vadd.f32 0.0, %v254
    %v256 = vpop.f32.mrb[0].mxu0
    %v257 = vadd.f32 0.0, %v256
    %258 = vmatprep.mubr.f32.mxu0 0.0
    %259 = vmatmul.mubr.f32.gmra.mrb[0].mxu0 %v111
    %v260 = vpop.f32.mrb[0].mxu0
    %v261 = vadd.f32 0.0, %v260
    %v262 = vpop.f32.mrb[0].mxu0
    %v263 = vadd.f32 0.0, %v262
    %264 = vmatprep.mubr.f32.mxu0 0.0
    %265 = vmatmul.mubr.f32.gmra.mrb[0].mxu0 %v114
    %v266 = vpop.f32.mrb[0].mxu0
    %v267 = vadd.f32 0.0, %v266
    %v268 = vpop.f32.mrb[0].mxu0
    %v269 = vadd.f32 0.0, %v268
    %270 = vmatprep.mubr.f32.mxu0 0.0
    %271 = vmatmul.mubr.f32.gmra.mrb[0].mxu0 %v117
    %v272 = vpop.f32.mrb[0].mxu0
    %v273 = vadd.f32 0.0, %v272
    %v274 = vpop.f32.mrb[0].mxu0
    %v275 = vadd.f32 0.0, %v274
    %276 = vmatprep.mubr.f32.mxu0 0.0
    %277 = vmatmul.mubr.f32.gmra.mrb[0].mxu0 %v120
    %v278 = vpop.f32.mrb[0].mxu0
    %v279 = vadd.f32 0.0, %v278
    %v280 = vpop.f32.mrb[0].mxu0
    %v281 = vadd.f32 0.0, %v280
    %282 = vdwg.mxu0
    %v283 = vmin.f32 %v189, %v195
    %v284 = vmin.f32 %v191, %v197
    %v285 = vmin.f32 %v283, %v201
    %v286 = vmin.f32 %v284, %v203
    %v287 = vmin.f32 %v285, %v207
    %v288 = vmin.f32 %v286, %v209
    %v289 = vmin.f32 %v287, %v213
    %v290 = vmin.f32 %v288, %v215
    %v291 = vmin.f32 %v289, %v219
    %v292 = vmin.f32 %v290, %v221
    %v293 = vmin.f32 %v291, %v225
    %v294 = vmin.f32 %v292, %v227
    %v295 = vmin.f32 %v293, %v231
    %v296 = vmin.f32 %v294, %v233
    %v297 = vmin.f32 %v295, %v237
    %v298 = vmin.f32 %v296, %v239
    %v299 = vmin.f32 %v297, %v243
    %v300 = vmin.f32 %v298, %v245
    %v301 = vmin.f32 %v299, %v249
    %v302 = vmin.f32 %v300, %v251
    %v303 = vmin.f32 %v301, %v255
    %v304 = vmin.f32 %v302, %v257
    %v305 = vmin.f32 %v303, %v261
    %v306 = vmin.f32 %v304, %v263
    %v307 = vmin.f32 %v305, %v267
    %v308 = vmin.f32 %v306, %v269
    %v309 = vmin.f32 %v307, %v273
    %v310 = vmin.f32 %v308, %v275
    %v311 = vmin.f32 %v309, %v279
    %v312 = vmin.f32 %v310, %v281
    %v313 = vmin.f32 %v311, 3e+09
    %v314 = vmin.f32 %v312, 3e+09
    %s315 = scalar_lea.vmem [#allocation2], 8
    %v316 = vld [vmem:[%s315] sm:$0xff]
    %317 = vxpose.xlu0.b32.start [1/16] %v316, 128
    %318 = vxpose.xlu0.b32.cont [2/16] 0.0, 128
    %319 = vxpose.xlu0.b32.cont [3/16] 0.0, 128
    %320 = vxpose.xlu0.b32.cont [4/16] 0.0, 128
    %321 = vxpose.xlu0.b32.cont [5/16] 0.0, 128
    %322 = vxpose.xlu0.b32.cont [6/16] 0.0, 128
    %323 = vxpose.xlu0.b32.cont [7/16] 0.0, 128
    %324 = vxpose.xlu0.b32.cont [8/16] 0.0, 128
    %325 = vxpose.xlu0.b32.cont [9/16] 0.0, 128
    %326 = vxpose.xlu0.b32.cont [10/16] 0.0, 128
    %327 = vxpose.xlu0.b32.cont [11/16] 0.0, 128
    %328 = vxpose.xlu0.b32.cont [12/16] 0.0, 128
    %329 = vxpose.xlu0.b32.cont [13/16] 0.0, 128
    %330 = vxpose.xlu0.b32.cont [14/16] 0.0, 128
    %331 = vxpose.xlu0.b32.cont [15/16] 0.0, 128
    %332 = vxpose.xlu0.b32.end [16/16] 0.0, 128
    %v333 = vpop.trf.xlu0
    %v334 = vpop.trf.xlu0
    %v335 = vpop.trf.xlu0
    %v336 = vpop.trf.xlu0
    %v337 = vpop.trf.xlu0
    %v338 = vpop.trf.xlu0
    %v339 = vpop.trf.xlu0
    %v340 = vpop.trf.xlu0
    %v341 = vpop.trf.xlu0
    %v342 = vpop.trf.xlu0
    %v343 = vpop.trf.xlu0
    %v344 = vpop.trf.xlu0
    %v345 = vpop.trf.xlu0
    %v346 = vpop.trf.xlu0
    %v347 = vpop.trf.xlu0
    %v348 = vpop.trf.xlu0
    %v350 = vsel %vm73, %v333, 0
    %v353 = vsel %vm73, %v334, 0
    %v356 = vsel %vm73, %v335, 0
    %v359 = vsel %vm73, %v336, 0
    %v362 = vsel %vm73, %v337, 0
    %v365 = vsel %vm73, %v338, 0
    %v368 = vsel %vm73, %v339, 0
    %v371 = vsel %vm73, %v340, 0
    %v374 = vsel %vm73, %v341, 0
    %v377 = vsel %vm73, %v342, 0
    %v380 = vsel %vm73, %v343, 0
    %v383 = vsel %vm73, %v344, 0
    %v386 = vsel %vm73, %v345, 0
    %v389 = vsel %vm73, %v346, 0
    %v392 = vsel %vm73, %v347, 0
    %v395 = vsel %vm73, %v348, 0
    %397 = vmatprep.subr.mxu0 %v39
    %398 = vmatpush1.msra.mxu0 %v38
    %399 = vmatprep.subr.mxu0 0.0
    %400 = vmatpush1.msra.mxu0 0.0
    %401 = vmatprep.subr.mxu0 0.0
    %402 = vmatpush1.msra.mxu0 0.0
    %403 = vmatprep.subr.mxu0 0.0
    %404 = vmatpush1.msra.mxu0 0.0
    %405 = vmatprep.subr.mxu0 0.0
    %406 = vmatpush1.msra.mxu0 0.0
    %407 = vmatprep.subr.mxu0 0.0
    %408 = vmatpush1.msra.mxu0 0.0
    %409 = vmatprep.subr.mxu0 0.0
    %410 = vmatpush1.msra.mxu0 0.0
    %411 = vmatprep.subr.mxu0 0.0
    %412 = vmatpush1.msra.mxu0 0.0
    %413 = vmatprep.subr.mxu0 0.0
    %414 = vmatpush1.msra.mxu0 0.0
    %415 = vmatprep.subr.mxu0 0.0
    %416 = vmatpush1.msra.mxu0 0.0
    %417 = vmatprep.subr.mxu0 0.0
    %418 = vmatpush1.msra.mxu0 0.0
    %419 = vmatprep.subr.mxu0 0.0
    %420 = vmatpush1.msra.mxu0 0.0
    %421 = vmatprep.subr.mxu0 0.0
    %422 = vmatpush1.msra.mxu0 0.0
    %423 = vmatprep.subr.mxu0 0.0
    %424 = vmatpush1.msra.mxu0 0.0
    %425 = vmatprep.subr.mxu0 0.0
    %426 = vmatpush1.msra.mxu0 0.0
    %427 = vmatprep.subr.mxu0 0.0
    %428 = vmatpush1.msra.mxu0 0.0
    %429 = vmatprep.subr.mxu0 0.0
    %430 = vmatpush1.msra.mxu0 0.0
    %431 = vmatprep.subr.mxu0 0.0
    %432 = vmatpush1.msra.mxu0 0.0
    %433 = vmatprep.subr.mxu0 0.0
    %434 = vmatpush1.msra.mxu0 0.0
    %435 = vmatprep.subr.mxu0 0.0
    %436 = vmatpush1.msra.mxu0 0.0
    %437 = vmatprep.subr.mxu0 0.0
    %438 = vmatpush1.msra.mxu0 0.0
    %439 = vmatprep.subr.mxu0 0.0
    %440 = vmatpush1.msra.mxu0 0.0
    %441 = vmatprep.subr.mxu0 0.0
    %442 = vmatpush1.msra.mxu0 0.0
    %443 = vmatprep.subr.mxu0 0.0
    %444 = vmatpush1.msra.mxu0 0.0
    %445 = vmatprep.subr.mxu0 0.0
    %446 = vmatpush1.msra.mxu0 0.0
    %447 = vmatprep.subr.mxu0 0.0
    %448 = vmatpush1.msra.mxu0 0.0
    %449 = vmatprep.subr.mxu0 0.0
    %450 = vmatpush1.msra.mxu0 0.0
    %451 = vmatprep.subr.mxu0 0.0
    %452 = vmatpush1.msra.mxu0 0.0
    %453 = vmatprep.subr.mxu0 0.0
    %454 = vmatpush1.msra.mxu0 0.0
    %455 = vmatprep.subr.mxu0 0.0
    %456 = vmatpush1.msra.mxu0 0.0
    %457 = vmatprep.subr.mxu0 0.0
    %458 = vmatpush1.msra.mxu0 0.0
    %459 = vmatprep.subr.mxu0 0.0
    %460 = vmatpush1.msra.mxu0 0.0
    %461 = vmatprep.mubr.f32.mxu0 0.0
    %462 = vmatmul.mubr.f32.gmra.mrb[0].mxu0 %v350
    %v463 = vpop.f32.mrb[0].mxu0
    %v464 = vadd.f32 0.0, %v463
    %v465 = vpop.f32.mrb[0].mxu0
    %v466 = vadd.f32 0.0, %v465
    %467 = vmatprep.mubr.f32.mxu0 0.0
    %468 = vmatmul.mubr.f32.gmra.mrb[0].mxu0 %v353
    %v469 = vpop.f32.mrb[0].mxu0
    %v470 = vadd.f32 0.0, %v469
    %v471 = vpop.f32.mrb[0].mxu0
    %v472 = vadd.f32 0.0, %v471
    %473 = vmatprep.mubr.f32.mxu0 0.0
    %474 = vmatmul.mubr.f32.gmra.mrb[0].mxu0 %v356
    %v475 = vpop.f32.mrb[0].mxu0
    %v476 = vadd.f32 0.0, %v475
    %v477 = vpop.f32.mrb[0].mxu0
    %v478 = vadd.f32 0.0, %v477
    %479 = vmatprep.mubr.f32.mxu0 0.0
    %480 = vmatmul.mubr.f32.gmra.mrb[0].mxu0 %v359
    %v481 = vpop.f32.mrb[0].mxu0
    %v482 = vadd.f32 0.0, %v481
    %v483 = vpop.f32.mrb[0].mxu0
    %v484 = vadd.f32 0.0, %v483
    %485 = vmatprep.mubr.f32.mxu0 0.0
    %486 = vmatmul.mubr.f32.gmra.mrb[0].mxu0 %v362
    %v487 = vpop.f32.mrb[0].mxu0
    %v488 = vadd.f32 0.0, %v487
    %v489 = vpop.f32.mrb[0].mxu0
    %v490 = vadd.f32 0.0, %v489
    %491 = vmatprep.mubr.f32.mxu0 0.0
    %492 = vmatmul.mubr.f32.gmra.mrb[0].mxu0 %v365
    %v493 = vpop.f32.mrb[0].mxu0
    %v494 = vadd.f32 0.0, %v493
    %v495 = vpop.f32.mrb[0].mxu0
    %v496 = vadd.f32 0.0, %v495
    %497 = vmatprep.mubr.f32.mxu0 0.0
    %498 = vmatmul.mubr.f32.gmra.mrb[0].mxu0 %v368
    %v499 = vpop.f32.mrb[0].mxu0
    %v500 = vadd.f32 0.0, %v499
    %v501 = vpop.f32.mrb[0].mxu0
    %v502 = vadd.f32 0.0, %v501
    %503 = vmatprep.mubr.f32.mxu0 0.0
    %504 = vmatmul.mubr.f32.gmra.mrb[0].mxu0 %v371
    %v505 = vpop.f32.mrb[0].mxu0
    %v506 = vadd.f32 0.0, %v505
    %v507 = vpop.f32.mrb[0].mxu0
    %v508 = vadd.f32 0.0, %v507
    %509 = vmatprep.mubr.f32.mxu0 0.0
    %510 = vmatmul.mubr.f32.gmra.mrb[0].mxu0 %v374
    %v511 = vpop.f32.mrb[0].mxu0
    %v512 = vadd.f32 0.0, %v511
    %v513 = vpop.f32.mrb[0].mxu0
    %v514 = vadd.f32 0.0, %v513
    %515 = vmatprep.mubr.f32.mxu0 0.0
    %516 = vmatmul.mubr.f32.gmra.mrb[0].mxu0 %v377
    %v517 = vpop.f32.mrb[0].mxu0
    %v518 = vadd.f32 0.0, %v517
    %v519 = vpop.f32.mrb[0].mxu0
    %v520 = vadd.f32 0.0, %v519
    %521 = vmatprep.mubr.f32.mxu0 0.0
    %522 = vmatmul.mubr.f32.gmra.mrb[0].mxu0 %v380
    %v523 = vpop.f32.mrb[0].mxu0
    %v524 = vadd.f32 0.0, %v523
    %v525 = vpop.f32.mrb[0].mxu0
    %v526 = vadd.f32 0.0, %v525
    %527 = vmatprep.mubr.f32.mxu0 0.0
    %528 = vmatmul.mubr.f32.gmra.mrb[0].mxu0 %v383
    %v529 = vpop.f32.mrb[0].mxu0
    %v530 = vadd.f32 0.0, %v529
    %v531 = vpop.f32.mrb[0].mxu0
    %v532 = vadd.f32 0.0, %v531
    %533 = vmatprep.mubr.f32.mxu0 0.0
    %534 = vmatmul.mubr.f32.gmra.mrb[0].mxu0 %v386
    %v535 = vpop.f32.mrb[0].mxu0
    %v536 = vadd.f32 0.0, %v535
    %v537 = vpop.f32.mrb[0].mxu0
    %v538 = vadd.f32 0.0, %v537
    %539 = vmatprep.mubr.f32.mxu0 0.0
    %540 = vmatmul.mubr.f32.gmra.mrb[0].mxu0 %v389
    %v541 = vpop.f32.mrb[0].mxu0
    %v542 = vadd.f32 0.0, %v541
    %v543 = vpop.f32.mrb[0].mxu0
    %v544 = vadd.f32 0.0, %v543
    %545 = vmatprep.mubr.f32.mxu0 0.0
    %546 = vmatmul.mubr.f32.gmra.mrb[0].mxu0 %v392
    %v547 = vpop.f32.mrb[0].mxu0
    %v548 = vadd.f32 0.0, %v547
    %v549 = vpop.f32.mrb[0].mxu0
    %v550 = vadd.f32 0.0, %v549
    %551 = vmatprep.mubr.f32.mxu0 0.0
    %552 = vmatmul.mubr.f32.gmra.mrb[0].mxu0 %v395
    %v553 = vpop.f32.mrb[0].mxu0
    %v554 = vadd.f32 0.0, %v553
    %v555 = vpop.f32.mrb[0].mxu0
    %v556 = vadd.f32 0.0, %v555
    %557 = vdwg.mxu0
    %v558 = vmin.f32 %v464, %v470
    %v559 = vmin.f32 %v466, %v472
    %v560 = vmin.f32 %v558, %v476
    %v561 = vmin.f32 %v559, %v478
    %v562 = vmin.f32 %v560, %v482
    %v563 = vmin.f32 %v561, %v484
    %v564 = vmin.f32 %v562, %v488
    %v565 = vmin.f32 %v563, %v490
    %v566 = vmin.f32 %v564, %v494
    %v567 = vmin.f32 %v565, %v496
    %v568 = vmin.f32 %v566, %v500
    %v569 = vmin.f32 %v567, %v502
    %v570 = vmin.f32 %v568, %v506
    %v571 = vmin.f32 %v569, %v508
    %v572 = vmin.f32 %v570, %v512
    %v573 = vmin.f32 %v571, %v514
    %v574 = vmin.f32 %v572, %v518
    %v575 = vmin.f32 %v573, %v520
    %v576 = vmin.f32 %v574, %v524
    %v577 = vmin.f32 %v575, %v526
    %v578 = vmin.f32 %v576, %v530
    %v579 = vmin.f32 %v577, %v532
    %v580 = vmin.f32 %v578, %v536
    %v581 = vmin.f32 %v579, %v538
    %v582 = vmin.f32 %v580, %v542
    %v583 = vmin.f32 %v581, %v544
    %v584 = vmin.f32 %v582, %v548
    %v585 = vmin.f32 %v583, %v550
    %v586 = vmin.f32 %v584, %v554
    %v587 = vmin.f32 %v585, %v556
    %v588 = vmin.f32 %v313, %v586
    %v589 = vmin.f32 %v314, %v587
    %v590 = vrot.slane %v588, 4
    %v591 = vmin.f32 %v588, %v590
    %v592 = vrot.slane %v591, 2
    %v593 = vmin.f32 %v591, %v592
    %v594 = vrot.slane %v593, 1
    %v595 = vmin.f32 %v593, %v594
    %v596 = vrot.slane %v589, 4
    %v597 = vmin.f32 %v589, %v596
    %v598 = vrot.slane %v597, 2
    %v599 = vmin.f32 %v597, %v598
    %v600 = vrot.slane %v599, 1
    %v601 = vmin.f32 %v599, %v600
    %v602 = vadd.f32 %v595, %v38
    %v603 = vadd.f32 %v601, %v39
    %v604 = vmax.f32 %v602, 0.0
    %v605 = vmax.f32 %v603, 0.0
    %v606 = vrsqrt.pop %v604
    %v607 = vmul.f32 %v604, %v606
    %vm608 = vcmp.eq.f32.partialorder %v604, inf
    %v609 = vsel %vm608, %v604, %v607
    %vm610 = vcmp.eq.f32.partialorder %v604, 0.0
    %v611 = vand.u32 %v604, 2147483648
    %v612 = vsel %vm610, %v611, %v609
    %v613 = vrsqrt.pop %v605
    %v614 = vmul.f32 %v605, %v613
    %vm615 = vcmp.eq.f32.partialorder %v605, inf
    %v616 = vsel %vm615, %v605, %v614
    %vm617 = vcmp.eq.f32.partialorder %v605, 0.0
    %v618 = vand.u32 %v605, 2147483648
    %v619 = vsel %vm617, %v618, %v616
    %v622 = vrot.slane %v38, 1
    %v623 = vrot.slane %v39, 1
    %v626 = vmul.f32 %v612, %v622
    %v627 = vmul.f32 %v619, %v623
    %v630 = vcombine.high %v626, %v627
    %v632 = vunpack.c.l.s4 1966171168
    %v633 = vunpack.c.0.s8 %v632
    %v634 = vlaneseq
    %v635 = vshrl.u32 %v634, 7
    %v636 = vsub.s32 %v633, %v635
    %v637 = vrot.slane %v630, %v636
    %v638 = vcombine.high %v637, %v637
    %v640 = vunpack.c.l.s4 1966171168
    %v641 = vunpack.c.0.s8 %v640
    %v642 = vlaneseq
    %v643 = vshrl.u32 %v642, 7
    %v644 = vsub.s32 %v641, %v643
    %v645 = vrot.slane %v638, %v644
    %v647 = vlaneseq
    %vm648 = vcmp.ge.s32.totalorder %v647, 0
    %vm649 = vcmp.lt.s32.totalorder %v647, 256
    %vm650 = vmand %vm648, %vm649
    %651 = vst.msk [vmem:[#allocation7] sm:$0x3] %vm650, %v645
    // Predicated region
    $region18: #{tpu_custom_call.1} parent=1 // pred_check
      _
    $region19: #{tpu_custom_call.1} parent=1 // pred_check_branch
      %653 = sbr.rel (0) target = $region21
    $region20: #{tpu_custom_call.1} parent=1 // pred_region
      %s655 = ssub.s32 32, 32
      %656 = vsyncadd [#allocation4], %s655
      %s658 = sshll.u32 [#allocation7], 4
      %s659 = int_to_ptr.vmem [resolvable:$true] %s658
      %661 = dma.vmem_to_hbm [thread:$0]  %s659, 32, %s2, [#allocation4]
    $region21: #{tpu_custom_call.1} parent=1 // pred_fallthru
      _
    // Predicated region
    $region22: #{tpu_custom_call.1} parent=1 // pred_check
      _
    $region23: #{tpu_custom_call.1} parent=1 // pred_check_branch
      %663 = sbr.rel (0) target = $region25
    $region24: #{tpu_custom_call.1} parent=1 // pred_region
      %664 = dma.done [#allocation4], 32
    $region25: #{tpu_custom_call.1} parent=1 // pred_fallthru
      _
    %665 = vsyncpa [#allocation3], 1
    %666 = vsyncpa [#allocation6], 1
    %667 = vsyncpa [#allocation4], 1

</llo_original>
